<compile_context>
chip_gen: v5e
topology: v5e:2x2
jax: 0.10.0
libtpu: 0.0.40
codegen_flags: <defaults>
</compile_context>

<pallas_src>
import jax
import jax.numpy as jnp
from jax.experimental import pallas as pl
from jax.experimental.pallas import tpu as pltpu


def _round_up(a, b):
    return ((a + b - 1) // b) * b


# ----------------------------- Pallas kernels ------------------------------

def _conv_gemm_bnstats_kernel(x_ref, w_ref, y_ref, stats_ref):
    # x_ref: (TM, K) bf16, w_ref: (K, TN) bf16
    # y_ref: (TM, TN) bf16, stats_ref: (1, 2, TN) f32
    y = jnp.dot(x_ref[...], w_ref[...], preferred_element_type=jnp.float32)
    y_ref[...] = y.astype(y_ref.dtype)
    # BN-stats epilogue on the f32 accumulator (single pass over the slab).
    stats_ref[0, 0:1, :] = jnp.sum(y, axis=0, keepdims=True)
    stats_ref[0, 1:2, :] = jnp.sum(y * y, axis=0, keepdims=True)


def _bn_relu_nchw_kernel(y_ref, scale_ref, shift_ref, o_ref):
    # y_ref: (TM, Cp) bf16, scale/shift: (1, Cp) f32, o_ref: (1, Cp, TM) f32
    y = y_ref[...].astype(jnp.float32)              # f32 elementwise math
    z = jnp.maximum(y * scale_ref[...] + shift_ref[...], 0.0)
    o_ref[...] = jnp.transpose(z, (1, 0))[None]     # XLU transpose -> channel-major


# ------------------------------ host wrappers -------------------------------

def _conv_gemm_stats(x2d, w2d, tile_m, tile_n):
    Mp, K = x2d.shape
    _, Cp = w2d.shape
    g_m = Mp // tile_m
    g_n = Cp // tile_n
    # Cout tiles outermost: weight block index is constant over the inner m-loop.
    grid = (g_n, g_m)
    return pl.pallas_call(
        _conv_gemm_bnstats_kernel,
        grid=grid,
        in_specs=[
            pl.BlockSpec((tile_m, K), lambda j, i: (i, 0)),
            pl.BlockSpec((K, tile_n), lambda j, i: (0, j)),
        ],
        out_specs=(
            pl.BlockSpec((tile_m, tile_n), lambda j, i: (i, j)),
            pl.BlockSpec((1, 2, tile_n), lambda j, i: (i, 0, j)),
        ),
        out_shape=(
            jax.ShapeDtypeStruct((Mp, Cp), jnp.bfloat16),
            jax.ShapeDtypeStruct((g_m, 2, Cp), jnp.float32),
        ),
        compiler_params=pltpu.CompilerParams(
            dimension_semantics=("parallel", "parallel"),
            vmem_limit_bytes=32 * 1024 * 1024,
        ),
    )(x2d, w2d)


def _bn_relu_to_nchw(y2d, scale, shift, n_batch, tile_m, tps):
    Mp, Cp = y2d.shape
    g_m = Mp // tile_m
    HWp = tps * tile_m
    return pl.pallas_call(
        _bn_relu_nchw_kernel,
        grid=(g_m,),
        in_specs=[
            pl.BlockSpec((tile_m, Cp), lambda i: (i, 0)),
            pl.BlockSpec((1, Cp), lambda i: (0, 0)),
            pl.BlockSpec((1, Cp), lambda i: (0, 0)),
        ],
        out_specs=pl.BlockSpec((1, Cp, tile_m), lambda i: (i // tps, 0, i % tps)),
        out_shape=jax.ShapeDtypeStruct((n_batch, Cp, HWp), jnp.float32),
        compiler_params=pltpu.CompilerParams(
            dimension_semantics=("parallel",),
            vmem_limit_bytes=32 * 1024 * 1024,
        ),
    )(y2d, scale, shift)


def basic_conv2d(x_nchw, weight, gamma, beta, *,
                 stride=1, padding=0, dilation=1, eps=1e-5, tile_m=512):
    """Forward of BasicConv2d.

    x_nchw : (N, Cin, H, W) float32
    weight : (Cout, Cin, kH, kW) float32   (PyTorch Conv2d weight layout)
    gamma, beta : (Cout,) float32          (BatchNorm2d affine params)
    returns (N, Cout, Hout, Wout) float32
    """
    N, Cin, H, W = x_nchw.shape
    Cout, _, kH, kW = weight.shape
    s, p, d = stride, padding, dilation

    Hout = (H + 2 * p - d * (kH - 1) - 1) // s + 1
    Wout = (W + 2 * p - d * (kW - 1) - 1) // s + 1
    HW = Hout * Wout
    M = N * HW                      # true (unpadded) row count for BN stats
    K = kH * kW * Cin

    # --- tiling: per-sample spatial tiles (so the NCHW write needs no reorder) ---
    if tile_m >= HW:
        tile_m = _round_up(HW, 8)           # one spatial tile per sample
    else:
        tile_m = _round_up(tile_m, 128)     # lane-dense NCHW output tiles
    HWp = _round_up(HW, tile_m)
    tps = HWp // tile_m                      # spatial tiles per sample
    Mp = N * HWp

    if Cout <= 128:
        Cp, tile_n = 128, 128
    else:
        Cp = _round_up(Cout, 256)            # 256-wide N tiles fill 256x256 MXU
        tile_n = 256

    # --- glue: NCHW -> NHWC (bf16), zero-pad, im2col patches -> (Mp, K) bf16 ---
    x_nhwc = jnp.transpose(x_nchw, (0, 2, 3, 1)).astype(jnp.bfloat16)
    x_pad = jnp.pad(x_nhwc, ((0, 0), (p, p), (p, p), (0, 0)))
    taps = []
    for kh in range(kH):
        for kw in range(kW):
            h0, w0 = kh * d, kw * d
            taps.append(x_pad[:, h0:h0 + s * (Hout - 1) + 1:s,
                              w0:w0 + s * (Wout - 1) + 1:s, :])
    x2d = jnp.stack(taps, axis=3).reshape(N, HW, K)        # feature order (tap, Cin)
    x2d = jnp.pad(x2d, ((0, 0), (0, HWp - HW), (0, 0))).reshape(Mp, K)

    # weight (Cout, Cin, kH, kW) -> (kH, kW, Cin, Cout) -> (K, Cp) bf16 (same order)
    w2d = jnp.transpose(weight, (2, 3, 1, 0)).reshape(K, Cout)
    w2d = jnp.pad(w2d, ((0, 0), (0, Cp - Cout))).astype(jnp.bfloat16)

    # --- hot path 1: conv-as-GEMM (bf16 in, f32 acc) with fused BN-stats epilogue ---
    y2d, stats = _conv_gemm_stats(x2d, w2d, tile_m, tile_n)   # (Mp,Cp) bf16, (g,2,Cp) f32

    # --- tiny glue: finish batch stats, fold BN affine into scale/shift ---
    cnt = jnp.float32(M)                                   # padded rows are exact zeros
    mean = jnp.sum(stats[:, 0, :], axis=0) / cnt
    var = jnp.maximum(jnp.sum(stats[:, 1, :], axis=0) / cnt - mean * mean, 0.0)
    inv = jax.lax.rsqrt(var + eps)
    gamma_p = jnp.pad(gamma.astype(jnp.float32), (0, Cp - Cout), constant_values=1.0)
    beta_p = jnp.pad(beta.astype(jnp.float32), (0, Cp - Cout))
    scale = (gamma_p * inv).reshape(1, Cp)
    shift = (beta_p - mean * gamma_p * inv).reshape(1, Cp)

    # --- hot path 2: BN-apply + ReLU, written channel-major (NCHW layout) ---
    o = _bn_relu_to_nchw(y2d, scale, shift, N, tile_m, tps)   # (N, Cp, HWp) f32

    # --- glue: only slice off padding; no output transpose needed ---
    return o[:, :Cout, :HW].reshape(N, Cout, Hout, Wout)


# ------------------------------- reference ----------------------------------

def _reference(x, weight, gamma, beta, *, stride=1, padding=0, dilation=1, eps=1e-5):
    y = jax.lax.conv_general_dilated(
        x, weight,
        window_strides=(stride, stride),
        padding=[(padding, padding), (padding, padding)],
        rhs_dilation=(dilation, dilation),
        dimension_numbers=("NCHW", "OIHW", "NCHW"),
        precision=jax.lax.Precision.HIGHEST,
    )
    mean = jnp.mean(y, axis=(0, 2, 3), keepdims=True)
    var = jnp.mean((y - mean) ** 2, axis=(0, 2, 3), keepdims=True)
    yn = (y - mean) * jax.lax.rsqrt(var + eps)
    yn = yn * gamma.reshape(1, -1, 1, 1) + beta.reshape(1, -1, 1, 1)
    return jnp.maximum(yn, 0.0)


# --------------------------------- main --------------------------------------

if __name__ == "__main__":
    key = jax.random.PRNGKey(0)
    k_x, k_w, k_g, k_b = jax.random.split(key, 4)

    # BasicConv2d(in_planes=4, out_planes=32, kernel_size=3, stride=1, padding=1)
    N, Cin, H, W = 2, 4, 16, 16
    Cout, kH, kW = 32, 3, 3
    stride, padding, dilation = 1, 1, 1

    x = jax.random.normal(k_x, (N, Cin, H, W), dtype=jnp.float32)
    weight = 0.1 * jax.random.normal(k_w, (Cout, Cin, kH, kW), dtype=jnp.float32)
    gamma = 1.0 + 0.1 * jax.random.normal(k_g, (Cout,), dtype=jnp.float32)
    beta = 0.1 * jax.random.normal(k_b, (Cout,), dtype=jnp.float32)

    # HW = 256, tile_m = 128 -> 2 spatial tiles per sample, 4 GEMM grid steps.
    out = basic_conv2d(x, weight, gamma, beta,
                       stride=stride, padding=padding, dilation=dilation, tile_m=128)
    out = jax.block_until_ready(out)

    ref = _reference(x, weight, gamma, beta,
                     stride=stride, padding=padding, dilation=dilation)
    assert out.shape == (N, Cout, H, W), out.shape
    max_err = float(jnp.max(jnp.abs(out - ref)))
    # bf16 GEMM inputs + bf16 intermediate slab -> looser tolerance than pure f32.
    assert jnp.allclose(out, ref, atol=2e-2, rtol=2e-2), max_err

    print("KERNEL_OK")
</pallas_src>

<mosaic_0001>
module attributes {stable_mosaic.version = 11 : i64} {
  func.func @_conv_gemm_bnstats_kernel(%arg0: i32, %arg1: i32, %arg2: memref<128x36xbf16, #tpu.memory_space<vmem>>, %arg3: memref<36x128xbf16, #tpu.memory_space<vmem>>, %arg4: memref<128x128xbf16, #tpu.memory_space<vmem>>, %arg5: memref<1x2x128xf32, #tpu.memory_space<vmem>>) attributes {dimension_semantics = [#tpu.dimension_semantics<parallel>, #tpu.dimension_semantics<parallel>], iteration_bounds = array<i64: 1, 4>, scalar_prefetch = 0 : i64, scratch_operands = 0 : i64, tpu.core_type = #tpu.core_type<tc>, window_params = [{transform_indices = @transform_0, window_bounds = array<i64: 128, 36>}, {transform_indices = @transform_1, window_bounds = array<i64: 36, 128>}, {transform_indices = @transform_2, window_bounds = array<i64: 128, 128>}, {transform_indices = @transform_3, window_bounds = array<i64: 1, 2, 128>}]} {
    %c0 = arith.constant 0 : index
    %c0_0 = arith.constant 0 : index
    %0 = vector.load %arg2[%c0, %c0_0] : memref<128x36xbf16, #tpu.memory_space<vmem>>, vector<128x36xbf16>
    %c0_1 = arith.constant 0 : index
    %c0_2 = arith.constant 0 : index
    %1 = vector.load %arg3[%c0_1, %c0_2] : memref<36x128xbf16, #tpu.memory_space<vmem>>, vector<36x128xbf16>
    %cst = arith.constant dense<0.000000e+00> : vector<128x128xf32>
    %2 = tpu.matmul %0, %1, %cst {dimension_numbers = #tpu.dot_dimension_numbers<[1], [0], [0], [1], [0, 0, 1, 1], [], []>} : vector<128x36xbf16>, vector<36x128xbf16>, vector<128x128xf32> -> vector<128x128xf32>
    %3 = arith.truncf %2 : vector<128x128xf32> to vector<128x128xbf16>
    %c0_3 = arith.constant 0 : index
    %c0_4 = arith.constant 0 : index
    %4 = vector.load %arg4[%c0_3, %c0_4] : memref<128x128xbf16, #tpu.memory_space<vmem>>, vector<128x128xbf16>
    tpu.vector_store %arg4[%c0_3, %c0_4], %3 {strides = array<i32>} : memref<128x128xbf16, #tpu.memory_space<vmem>>, vector<128x128xbf16>,
    %cst_5 = arith.constant dense<0.000000e+00> : vector<128xf32>
    %5 = vector.multi_reduction <add>, %2, %cst_5 [0] : vector<128x128xf32> to vector<128xf32>
    %6 = vector.shape_cast %5 : vector<128xf32> to vector<1x128xf32>
    %c0_6 = arith.constant 0 : index
    %c0_7 = arith.constant 0 : index
    %c0_8 = arith.constant 0 : index
    %7 = vector.load %arg5[%c0_6, %c0_7, %c0_8] : memref<1x2x128xf32, #tpu.memory_space<vmem>>, vector<1x1x128xf32>
    %8 = vector.shape_cast %7 : vector<1x1x128xf32> to vector<1x128xf32>
    %9 = vector.shape_cast %6 : vector<1x128xf32> to vector<1x1x128xf32>
    tpu.vector_store %arg5[%c0_6, %c0_7, %c0_8], %9 {strides = array<i32>} : memref<1x2x128xf32, #tpu.memory_space<vmem>>, vector<1x1x128xf32>,
    %10 = arith.mulf %2, %2 : vector<128x128xf32>
    %cst_9 = arith.constant dense<0.000000e+00> : vector<128xf32>
    %11 = vector.multi_reduction <add>, %10, %cst_9 [0] : vector<128x128xf32> to vector<128xf32>
    %12 = vector.shape_cast %11 : vector<128xf32> to vector<1x128xf32>
    %c0_10 = arith.constant 0 : index
    %c1 = arith.constant 1 : index
    %c0_11 = arith.constant 0 : index
    %13 = vector.load %arg5[%c0_10, %c1, %c0_11] : memref<1x2x128xf32, #tpu.memory_space<vmem>>, vector<1x1x128xf32>
    %14 = vector.shape_cast %13 : vector<1x1x128xf32> to vector<1x128xf32>
    %15 = vector.shape_cast %12 : vector<1x128xf32> to vector<1x1x128xf32>
    tpu.vector_store %arg5[%c0_10, %c1, %c0_11], %15 {strides = array<i32>} : memref<1x2x128xf32, #tpu.memory_space<vmem>>, vector<1x1x128xf32>,
    return
  }
  func.func @transform_0(%arg0: i32, %arg1: i32) -> (i32, i32) {
    %c0_i32 = arith.constant 0 : i32
    %c0_i32_0 = arith.constant 0 : i32
    return %arg1, %c0_i32 : i32, i32
  }
  func.func @transform_1(%arg0: i32, %arg1: i32) -> (i32, i32) {
    %c0_i32 = arith.constant 0 : i32
    %c0_i32_0 = arith.constant 0 : i32
    return %c0_i32, %arg0 : i32, i32
  }
  func.func @transform_2(%arg0: i32, %arg1: i32) -> (i32, i32) {
    %c0_i32 = arith.constant 0 : i32
    return %arg1, %arg0 : i32, i32
  }
  func.func @transform_3(%arg0: i32, %arg1: i32) -> (i32, i32, i32) {
    %c0_i32 = arith.constant 0 : i32
    %c0_i32_0 = arith.constant 0 : i32
    return %arg1, %c0_i32, %arg0 : i32, i32, i32
  }
}

</mosaic_0001>

<llo_original>
// kernel: tpu_custom_call.1
$region0: #{tpu_custom_call.1}
  #allocation0 [shape = 'u32[]', space=smem, size = 0x4, offset = 0x4, fixed_abs, tag = 'smem constant byte address 0x4 - core index']
  #allocation1 [shape = 'u32[72,128]{1,0:T(1,128)}', space=vmem, size = 0x9000, scoped, tag = 'internal scratch']
  %s0 = inlined_call_operand.vmem [shape: bf16[512,36], index: 0, kind: input, shape index: {}]
  %s1 = inlined_call_operand.vmem [shape: bf16[36,128], index: 1, kind: input, shape index: {}]
  %s2 = inlined_call_operand.hbm [shape: bf16[512,128], index: 2, kind: output, shape index: {0}]
  %s3 = inlined_call_operand.hbm [shape: f32[4,2,128], index: 3, kind: output, shape index: {1}]
  %4 = xla_tuple %s2, %s3
  %s5 = sld [smem:[#allocation0]]
  $region49: #{tpu_custom_call.1} parent=0
    _
  %s7 = ssub.s32 1, %s5
  %s8 = scalar_select 0, %s7, %s5
  $region1: #{tpu_custom_call.1} parent=0
    #allocation2 [shape = 'u8[65536]{0}', space=vmem, size = 0x10000, scoped, tag = 'output window, operand 0']
    #allocation3 [shape = 's32[2]{0}', space=sflag, size = 0x8, scoped, tag = 'scoped memory for tpu_custom_call.1']
    #allocation4 [shape = 'u8[2048]{0}', space=vmem, size = 0x800, scoped, tag = 'output window, operand 1']
    #allocation5 [shape = 's32[2]{0}', space=sflag, size = 0x8, scoped, tag = 'scoped memory for tpu_custom_call.1']
    %9 = vsyncpa [#allocation3], 0
    %s10 = scalar_lea.sflag [#allocation3], 1
    %11 = vsyncpa %s10, 0
    %12 = vsyncpa [#allocation5], 0
    %s13 = scalar_lea.sflag [#allocation5], 1
    %14 = vsyncpa %s13, 0
    loop: start=0, step=1, limit=6
    $region2: #{tpu_custom_call.1} parent=1 // loop_pre_header
      _
    $region3: #{tpu_custom_call.1} parent=1 // loop_header
      %s16 = sphi 0, %s20
      %p17 = scmp.ge.s32.totalorder %s16, 6
      %s23 = sphi 0, %s35
      %s24 = sphi 0, %s31
      %s25 = sphi 0, %s23
      %s26 = sphi 0, %s24
      %s27 = sphi 0, %s25
      %s28 = sphi 0, %s26
      %s38 = sphi 0, %s40
      %s41 = sphi 0, %s38
      %s42 = sphi 0, %s41
      %s58 = sphi 0, %s42
      %s64 = sphi 0, %s66
      %s67 = sphi 0, %s64
      %s68 = sphi 0, %s67
      %s84 = sphi 0, %s68
      %s92 = sphi 0, %s94
      %s95 = sphi 0, %s92
      %s96 = sphi 0, %s95
      %s112 = sphi 0, %s96
      %s120 = sphi 0, %s122
      %s123 = sphi 0, %s120
      %s124 = sphi 0, %s123
      %s140 = sphi 0, %s124
    $region4: #{tpu_custom_call.1} parent=1 // loop_header_branch
      %19 = sbr.rel (%p17) target = $region8
    $region5: #{tpu_custom_call.1} parent=1 // loop_body
      %s21 = ssub.s32 %s16, 1
      %s22 = ssub.s32 %s16, 2
      %s29 = sadd.s32 1, %s24
      %p30 = scmp.ge.s32.totalorder %s29, 4
      %s31 = scalar_select %p30, 0, %s29
      %s32 = sadd.s32 1, %s23
      %s33 = scalar_select %p30, %s32, %s23
      %p34 = scmp.ge.s32.totalorder %s33, 1
      %s35 = scalar_select %p34, 0, %s33
      %s36 = ssub.s32 %s24, %s31
      %p37 = scmp.eq.s32.totalorder %s36, 0
      %s39 = sadd.s32 %s38, 1
      %s40 = scalar_select %p37, %s38, %s39
      %p43 = pneg %p37
      %p44 = scmp.eq.s32.totalorder %s16, 3
      %p45 = por %p43, %p44
      %p46 = scmp.ne.s32.totalorder %s38, %s41
      %p47 = scmp.eq.s32.totalorder %s16, 0
      %p48 = por %p46, %p47
      %p49 = scmp.ne.s32.totalorder %s38, %s41
      %p50 = scmp.eq.s32.totalorder %s21, 3
      %p51 = por %p49, %p50
      %p52 = scmp.ne.s32.totalorder %s41, %s42
      %p53 = scmp.eq.s32.totalorder %s21, 0
      %p54 = por %p52, %p53
      %p55 = scmp.ne.s32.totalorder %s41, %s42
      %p56 = scmp.eq.s32.totalorder %s22, 3
      %p57 = por %p55, %p56
      %p59 = scmp.ne.s32.totalorder %s42, %s58
      %p60 = scmp.eq.s32.totalorder %s22, 0
      %p61 = por %p59, %p60
      %s62 = ssub.s32 %s23, %s35
      %p63 = scmp.eq.s32.totalorder %s62, 0
      %s65 = sadd.s32 %s64, 1
      %s66 = scalar_select %p63, %s64, %s65
      %p69 = pneg %p63
      %p70 = scmp.eq.s32.totalorder %s16, 3
      %p71 = por %p69, %p70
      %p72 = scmp.ne.s32.totalorder %s64, %s67
      %p73 = scmp.eq.s32.totalorder %s16, 0
      %p74 = por %p72, %p73
      %p75 = scmp.ne.s32.totalorder %s64, %s67
      %p76 = scmp.eq.s32.totalorder %s21, 3
      %p77 = por %p75, %p76
      %p78 = scmp.ne.s32.totalorder %s67, %s68
      %p79 = scmp.eq.s32.totalorder %s21, 0
      %p80 = por %p78, %p79
      %p81 = scmp.ne.s32.totalorder %s67, %s68
      %p82 = scmp.eq.s32.totalorder %s22, 3
      %p83 = por %p81, %p82
      %p85 = scmp.ne.s32.totalorder %s68, %s84
      %p86 = scmp.eq.s32.totalorder %s22, 0
      %p87 = por %p85, %p86
      %s88 = ssub.s32 %s24, %s31
      %s89 = ssub.s32 %s23, %s35
      %s90 = sor.u32 %s88, %s89
      %p91 = scmp.eq.s32.totalorder %s90, 0
      %s93 = sadd.s32 %s92, 1
      %s94 = scalar_select %p91, %s92, %s93
      %p97 = pneg %p91
      %p98 = scmp.eq.s32.totalorder %s16, 3
      %p99 = por %p97, %p98
      %p100 = scmp.ne.s32.totalorder %s92, %s95
      %p101 = scmp.eq.s32.totalorder %s16, 0
      %p102 = por %p100, %p101
      %p103 = scmp.ne.s32.totalorder %s92, %s95
      %p104 = scmp.eq.s32.totalorder %s21, 3
      %p105 = por %p103, %p104
      %p106 = scmp.ne.s32.totalorder %s95, %s96
      %p107 = scmp.eq.s32.totalorder %s21, 0
      %p108 = por %p106, %p107
      %p109 = scmp.ne.s32.totalorder %s95, %s96
      %p110 = scmp.eq.s32.totalorder %s22, 3
      %p111 = por %p109, %p110
      %p113 = scmp.ne.s32.totalorder %s96, %s112
      %p114 = scmp.eq.s32.totalorder %s22, 0
      %p115 = por %p113, %p114
      %s116 = ssub.s32 %s24, %s31
      %s117 = ssub.s32 %s23, %s35
      %s118 = sor.u32 %s116, %s117
      %p119 = scmp.eq.s32.totalorder %s118, 0
      %s121 = sadd.s32 %s120, 1
      %s122 = scalar_select %p119, %s120, %s121
      %p125 = pneg %p119
      %p126 = scmp.eq.s32.totalorder %s16, 3
      %p127 = por %p125, %p126
      %p128 = scmp.ne.s32.totalorder %s120, %s123
      %p129 = scmp.eq.s32.totalorder %s16, 0
      %p130 = por %p128, %p129
      %p131 = scmp.ne.s32.totalorder %s120, %s123
      %p132 = scmp.eq.s32.totalorder %s21, 3
      %p133 = por %p131, %p132
      %p134 = scmp.ne.s32.totalorder %s123, %s124
      %p135 = scmp.eq.s32.totalorder %s21, 0
      %p136 = por %p134, %p135
      %p137 = scmp.ne.s32.totalorder %s123, %s124
      %p138 = scmp.eq.s32.totalorder %s22, 3
      %p139 = por %p137, %p138
      %p141 = scmp.ne.s32.totalorder %s124, %s140
      %p142 = scmp.eq.s32.totalorder %s22, 0
      %p143 = por %p141, %p142
      %p144 = scmp.le.s32.totalorder 1, %s16
      %p145 = scmp.lt.s32.totalorder %s16, 5
      %p146 = pnand %p144, %p145
      %p147 = pneg %p146
      // Predicated region
      $region9: #{tpu_custom_call.1} parent=5 // pred_check
        _
      $region10: #{tpu_custom_call.1} parent=5 // pred_check_branch
        %149 = sbr.rel (%p146) target = $region12
      $region11: #{tpu_custom_call.1} parent=5 // pred_region
        %s150 = ssub.s32 %s16, 1
        // Predicated region
        $region13: #{tpu_custom_call.1} parent=11 // pred_check
          %p151 = pneg %p80
        $region14: #{tpu_custom_call.1} parent=11 // pred_check_branch
          %153 = sbr.rel (%p151) target = $region16
        $region15: #{tpu_custom_call.1} parent=11 // pred_region
          %p154 = scmp.lt.s32.totalorder %s25, 0
          %s155 = scalar_select %p154, %s25, 0
          %s156 = smul.addr %s155, 4
          %s157 = scalar_lea.vmem %s1, %s156
        $region16: #{tpu_custom_call.1} parent=11 // pred_fallthru
          _
      $region12: #{tpu_custom_call.1} parent=5 // pred_fallthru
        _
      %p158 = scmp.lt.s32.totalorder %s16, 4
      // Predicated region
      $region17: #{tpu_custom_call.1} parent=5 // pred_check
        %p159 = pneg %p158
      $region18: #{tpu_custom_call.1} parent=5 // pred_check_branch
        %161 = sbr.rel (%p159) target = $region20
      $region19: #{tpu_custom_call.1} parent=5 // pred_region
        // Predicated region
        $region21: #{tpu_custom_call.1} parent=19 // pred_check
          %p162 = pneg %p48
        $region22: #{tpu_custom_call.1} parent=19 // pred_check_branch
          %164 = sbr.rel (%p162) target = $region24
        $region23: #{tpu_custom_call.1} parent=19 // pred_region
          %s165 = smul.u32 16, %s24
          %p166 = scmp.lt.s32.totalorder %s165, 63
          %s167 = scalar_select %p166, %s165, 63
          %s168 = smul.addr %s167, 4
          %s169 = scalar_lea.vmem %s0, %s168
          %s170 = smul.u32 16, %s24
        $region24: #{tpu_custom_call.1} parent=19 // pred_fallthru
          _
      $region20: #{tpu_custom_call.1} parent=5 // pred_fallthru
        _
      %p171 = scmp.le.s32.totalorder 1, %s16
      %p172 = scmp.lt.s32.totalorder %s16, 5
      %p173 = pnand %p171, %p172
      %p174 = pneg %p173
      // Predicated region
      $region25: #{tpu_custom_call.1} parent=5 // pred_check
        _
      $region26: #{tpu_custom_call.1} parent=5 // pred_check_branch
        %176 = sbr.rel (%p173) target = $region28
      $region27: #{tpu_custom_call.1} parent=5 // pred_region
        %s177 = ssub.s32 %s16, 1
        %s178 = smul.u32 16, %s26
        %p179 = scmp.lt.s32.totalorder %s178, 63
        %s180 = scalar_select %p179, %s178, 63
        %s181 = smul.addr %s180, 4
        %s182 = scalar_lea.vmem %s0, %s181
        %p183 = pneg %p54
        %p184 = pneg %p51
        %p185 = scmp.lt.s32.totalorder %s25, 0
        %s186 = scalar_select %p185, %s25, 0
        %s187 = smul.addr %s186, 4
        %s188 = scalar_lea.vmem %s1, %s187
        %p189 = pneg %p80
        %p190 = pneg %p77
        %p191 = pneg %p108
        %p192 = pneg %p105
        %s193 = sand.u32 %s95, 1
        %s194 = scalar_lea.sflag [#allocation3], %s193
        %s195 = sand.u32 %s95, 1
        %s196 = smul.addr %s195, 64
        %s197 = scalar_lea.vmem [#allocation2], %s196
        %p198 = pneg %p136
        %p199 = pneg %p133
        %s200 = sand.u32 %s123, 1
        %s201 = scalar_lea.sflag [#allocation5], %s200
        %s202 = sand.u32 %s123, 1
        %s203 = smul.addr %s202, 2
        %s204 = scalar_lea.vmem [#allocation4], %s203
        %s205 = smul.u32 16, %s26
        %p206 = scmp.lt.s32.totalorder %s205, 63
        %s207 = scalar_select %p206, %s205, 63
        %s208 = smul.addr %s207, 4
        %s209 = scalar_lea.vmem %s0, %s208
        %s210 = smul.u32 16, %s26
        %p211 = scmp.lt.s32.totalorder %s25, 0
        %s212 = scalar_select %p211, %s25, 0
        %s213 = smul.addr %s212, 4
        %s214 = scalar_lea.vmem %s1, %s213
        %s215 = smul.u32 16, %s26
        %v217 = vld [vmem:[%s209] sm:$0xf]
        %v218 = vld [vmem:[%s209 + $0x4] sm:$0xf]
        %v219 = vld [vmem:[%s209 + $0x8] sm:$0xf]
        %v220 = vld [vmem:[%s209 + $0xc] sm:$0xf]
        %v221 = vld [vmem:[%s209 + $0x10] sm:$0xf]
        %v222 = vld [vmem:[%s209 + $0x14] sm:$0xf]
        %v223 = vld [vmem:[%s209 + $0x18] sm:$0xf]
        %v224 = vld [vmem:[%s209 + $0x1c] sm:$0xf]
        %v225 = vld [vmem:[%s209 + $0x20] sm:$0xf]
        %v226 = vld [vmem:[%s209 + $0x24] sm:$0xf]
        %v227 = vld [vmem:[%s209 + $0x28] sm:$0xf]
        %v228 = vld [vmem:[%s209 + $0x2c] sm:$0xf]
        %v229 = vld [vmem:[%s209 + $0x30] sm:$0xf]
        %v230 = vld [vmem:[%s209 + $0x34] sm:$0xf]
        %v231 = vld [vmem:[%s209 + $0x38] sm:$0xf]
        %v232 = vld [vmem:[%s209 + $0x3c] sm:$0xf]
        %v233 = vld [vmem:[%s214] sm:$0xf]
        %v234 = vld [vmem:[%s214 + $0x4] sm:$0xf]
        %v235 = vld [vmem:[%s214 + $0x8] sm:$0xf]
        %v236 = vld [vmem:[%s214 + $0xc] sm:$0xf]
        %v237 = vld [vmem:[%s214 + $0x10] sm:$0x3]
        %v254 = vunpack.c.l.b16 %v217
        %v255 = vunpack.c.l.b16 %v218
        %v256 = vunpack.c.l.b16 %v219
        %v257 = vunpack.c.l.b16 %v220
        %v258 = vunpack.c.l.b16 %v221
        %v259 = vunpack.c.l.b16 %v222
        %v260 = vunpack.c.l.b16 %v223
        %v261 = vunpack.c.l.b16 %v224
        %v262 = vunpack.c.l.b16 %v225
        %v263 = vunpack.c.l.b16 %v226
        %v264 = vunpack.c.l.b16 %v227
        %v265 = vunpack.c.l.b16 %v228
        %v266 = vunpack.c.l.b16 %v229
        %v267 = vunpack.c.l.b16 %v230
        %v268 = vunpack.c.l.b16 %v231
        %v269 = vunpack.c.l.b16 %v232
        %v270 = vpack.c.b16 %v255, %v254
        %v271 = vpack.c.b16 %v257, %v256
        %v272 = vpack.c.b16 %v259, %v258
        %v273 = vpack.c.b16 %v261, %v260
        %v274 = vpack.c.b16 %v263, %v262
        %v275 = vpack.c.b16 %v265, %v264
        %v276 = vpack.c.b16 %v267, %v266
        %v277 = vpack.c.b16 %v269, %v268
        %v283 = vunpack.c.l.b16 %v233
        %v284 = vunpack.c.l.b16 %v234
        %v285 = vunpack.c.l.b16 %v235
        %v286 = vunpack.c.l.b16 %v236
        %v287 = vunpack.c.l.b16 %v237
        %v288 = vpack.c.b16 %v284, %v283
        %v289 = vpack.c.b16 %v286, %v285
        %v290 = vpack.c.b16 %v287, %v287
        %vm293 = vcmask 293888
        %v295 = vsel %vm293, %v270, 0
        %v298 = vsel %vm293, %v271, 0
        %v301 = vsel %vm293, %v272, 0
        %v304 = vsel %vm293, %v273, 0
        %v307 = vsel %vm293, %v274, 0
        %v310 = vsel %vm293, %v275, 0
        %v313 = vsel %vm293, %v276, 0
        %v316 = vsel %vm293, %v277, 0
        %vm318 = vcmask 1041408
        %v320 = vsel %vm318, %v290, 0
        %322 = vmatpush.bf16.msra.mxu0 0
        %323 = vmatpush.bf16.msra.mxu0 0
        %324 = vmatpush.bf16.msra.mxu0 0
        %325 = vmatpush.bf16.msra.mxu0 0
        %326 = vmatpush.bf16.msra.mxu0 0
        %327 = vmatpush.bf16.msra.mxu0 %v320
        %328 = vmatpush.bf16.msra.mxu0 %v289
        %329 = vmatpush.bf16.msra.mxu0 %v288
        %330 = vmatmul.bf16.gmra.mxu0 %v295
        %v331 = vpop.f32.mrf.mxu0
        %v332 = vadd.f32 0.0, %v331
        %v333 = vpop.f32.mrf.mxu0
        %v334 = vadd.f32 0.0, %v333
        %335 = vmatmul.bf16.gmra.mxu0 %v298
        %v336 = vpop.f32.mrf.mxu0
        %v337 = vadd.f32 0.0, %v336
        %v338 = vpop.f32.mrf.mxu0
        %v339 = vadd.f32 0.0, %v338
        %340 = vmatmul.bf16.gmra.mxu0 %v301
        %v341 = vpop.f32.mrf.mxu0
        %v342 = vadd.f32 0.0, %v341
        %v343 = vpop.f32.mrf.mxu0
        %v344 = vadd.f32 0.0, %v343
        %345 = vmatmul.bf16.gmra.mxu0 %v304
        %v346 = vpop.f32.mrf.mxu0
        %v347 = vadd.f32 0.0, %v346
        %v348 = vpop.f32.mrf.mxu0
        %v349 = vadd.f32 0.0, %v348
        %350 = vmatmul.bf16.gmra.mxu0 %v307
        %v351 = vpop.f32.mrf.mxu0
        %v352 = vadd.f32 0.0, %v351
        %v353 = vpop.f32.mrf.mxu0
        %v354 = vadd.f32 0.0, %v353
        %355 = vmatmul.bf16.gmra.mxu0 %v310
        %v356 = vpop.f32.mrf.mxu0
        %v357 = vadd.f32 0.0, %v356
        %v358 = vpop.f32.mrf.mxu0
        %v359 = vadd.f32 0.0, %v358
        %360 = vmatmul.bf16.gmra.mxu0 %v313
        %v361 = vpop.f32.mrf.mxu0
        %v362 = vadd.f32 0.0, %v361
        %v363 = vpop.f32.mrf.mxu0
        %v364 = vadd.f32 0.0, %v363
        %365 = vmatmul.bf16.gmra.mxu0 %v316
        %v366 = vpop.f32.mrf.mxu0
        %v367 = vadd.f32 0.0, %v366
        %v368 = vpop.f32.mrf.mxu0
        %v369 = vadd.f32 0.0, %v368
        %370 = vdwg.mxu0
        %v371 = vpack.c.bf16 %v332, %v332
        %v372 = vpack.c.bf16 %v334, %v334
        %v373 = vpack.c.bf16 %v337, %v337
        %v374 = vpack.c.bf16 %v339, %v339
        %v375 = vpack.c.bf16 %v342, %v342
        %v376 = vpack.c.bf16 %v344, %v344
        %v377 = vpack.c.bf16 %v347, %v347
        %v378 = vpack.c.bf16 %v349, %v349
        %v379 = vpack.c.bf16 %v352, %v352
        %v380 = vpack.c.bf16 %v354, %v354
        %v381 = vpack.c.bf16 %v357, %v357
        %v382 = vpack.c.bf16 %v359, %v359
        %v383 = vpack.c.bf16 %v362, %v362
        %v384 = vpack.c.bf16 %v364, %v364
        %v385 = vpack.c.bf16 %v367, %v367
        %v386 = vpack.c.bf16 %v369, %v369
        %387 = vst [vmem:[%s197] sm:$0xf] %v371
        %388 = vst [vmem:[%s197 + $0x4] sm:$0xf] %v372
        %389 = vst [vmem:[%s197 + $0x8] sm:$0xf] %v373
        %390 = vst [vmem:[%s197 + $0xc] sm:$0xf] %v374
        %391 = vst [vmem:[%s197 + $0x10] sm:$0xf] %v375
        %392 = vst [vmem:[%s197 + $0x14] sm:$0xf] %v376
        %393 = vst [vmem:[%s197 + $0x18] sm:$0xf] %v377
        %394 = vst [vmem:[%s197 + $0x1c] sm:$0xf] %v378
        %395 = vst [vmem:[%s197 + $0x20] sm:$0xf] %v379
        %396 = vst [vmem:[%s197 + $0x24] sm:$0xf] %v380
        %397 = vst [vmem:[%s197 + $0x28] sm:$0xf] %v381
        %398 = vst [vmem:[%s197 + $0x2c] sm:$0xf] %v382
        %399 = vst [vmem:[%s197 + $0x30] sm:$0xf] %v383
        %400 = vst [vmem:[%s197 + $0x34] sm:$0xf] %v384
        %401 = vst [vmem:[%s197 + $0x38] sm:$0xf] %v385
        %402 = vst [vmem:[%s197 + $0x3c] sm:$0xf] %v386
        %v403 = vadd.f32 %v332, %v334
        %v404 = vadd.f32 %v403, %v337
        %v405 = vadd.f32 %v404, %v339
        %v406 = vadd.f32 %v405, %v342
        %v407 = vadd.f32 %v406, %v344
        %v408 = vadd.f32 %v407, %v347
        %v409 = vadd.f32 %v408, %v349
        %v410 = vadd.f32 %v409, %v352
        %v411 = vadd.f32 %v410, %v354
        %v412 = vadd.f32 %v411, %v357
        %v413 = vadd.f32 %v412, %v359
        %v414 = vadd.f32 %v413, %v362
        %v415 = vadd.f32 %v414, %v364
        %v416 = vadd.f32 %v415, %v367
        %v417 = vadd.f32 %v416, %v369
        %v418 = vrot.slane %v417, 4
        %v419 = vadd.f32 %v417, %v418
        %v420 = vrot.slane %v419, 2
        %v421 = vadd.f32 %v419, %v420
        %v422 = vrot.slane %v421, 1
        %v423 = vadd.f32 %v421, %v422
        %424 = vst [vmem:[%s204] sm:$0x1] %v423
        %v425 = vmul.f32 %v332, %v332
        %v426 = vmul.f32 %v334, %v334
        %v427 = vmul.f32 %v337, %v337
        %v428 = vmul.f32 %v339, %v339
        %v429 = vmul.f32 %v342, %v342
        %v430 = vmul.f32 %v344, %v344
        %v431 = vmul.f32 %v347, %v347
        %v432 = vmul.f32 %v349, %v349
        %v433 = vmul.f32 %v352, %v352
        %v434 = vmul.f32 %v354, %v354
        %v435 = vmul.f32 %v357, %v357
        %v436 = vmul.f32 %v359, %v359
        %v437 = vmul.f32 %v362, %v362
        %v438 = vmul.f32 %v364, %v364
        %v439 = vmul.f32 %v367, %v367
        %v440 = vmul.f32 %v369, %v369
        %v441 = vadd.f32 %v425, %v426
        %v442 = vadd.f32 %v441, %v427
        %v443 = vadd.f32 %v442, %v428
        %v444 = vadd.f32 %v443, %v429
        %v445 = vadd.f32 %v444, %v430
        %v446 = vadd.f32 %v445, %v431
        %v447 = vadd.f32 %v446, %v432
        %v448 = vadd.f32 %v447, %v433
        %v449 = vadd.f32 %v448, %v434
        %v450 = vadd.f32 %v449, %v435
        %v451 = vadd.f32 %v450, %v436
        %v452 = vadd.f32 %v451, %v437
        %v453 = vadd.f32 %v452, %v438
        %v454 = vadd.f32 %v453, %v439
        %v455 = vadd.f32 %v454, %v440
        %v456 = vrot.slane %v455, 4
        %v457 = vadd.f32 %v455, %v456
        %v458 = vrot.slane %v457, 2
        %v459 = vadd.f32 %v457, %v458
        %v460 = vrot.slane %v459, 1
        %v461 = vadd.f32 %v459, %v460
        %462 = vst [vmem:[%s204 + $0x1] sm:$0x1] %v461
        %s463 = sand.u32 %s95, 1
        %s464 = scalar_lea.sflag [#allocation3], %s463
        %s465 = sand.u32 %s95, 1
        %s466 = smul.addr %s465, 64
        %s467 = scalar_lea.vmem [#allocation2], %s466
        %s468 = sand.u32 %s123, 1
        %s469 = scalar_lea.sflag [#allocation5], %s468
        %s470 = sand.u32 %s123, 1
        %s471 = smul.addr %s470, 2
        %s472 = scalar_lea.vmem [#allocation4], %s471
        // Predicated region
        $region29: #{tpu_custom_call.1} parent=27 // pred_check
          %p473 = pneg %p105
        $region30: #{tpu_custom_call.1} parent=27 // pred_check_branch
          %475 = sbr.rel (%p473) target = $region32
        $region31: #{tpu_custom_call.1} parent=27 // pred_region
          %s476 = smul.u32 16, %s26
          %478 = vsyncadd %s464, 0
          %s479 = sadd.s32 %s25, %s476
          %s480 = smul.addr %s479, 4
          %s481 = scalar_lea.hbm %s2, %s480
          %s482 = sshll.u32 %s467, 4
          %s483 = int_to_ptr.vmem [resolvable:$true] %s482
          %s484 = sshll.u32 %s481, 4
          %s485 = int_to_ptr.hbm [resolvable:$true] %s484
          %490 = dma.vmem_to_hbm [thread:$0]  %s483, 1024, %s485, %s464, 64, 64, 4
        $region32: #{tpu_custom_call.1} parent=27 // pred_fallthru
          _
        // Predicated region
        $region33: #{tpu_custom_call.1} parent=27 // pred_check
          %p491 = pneg %p133
        $region34: #{tpu_custom_call.1} parent=27 // pred_check_branch
          %493 = sbr.rel (%p491) target = $region36
        $region35: #{tpu_custom_call.1} parent=27 // pred_region
          %495 = vsyncadd %s469, 0
          %s496 = sadd.s32 %s25, %s26
          %s497 = smul.addr %s496, 2
          %s498 = scalar_lea.hbm %s3, %s497
          %s500 = sshll.u32 %s472, 4
          %s501 = int_to_ptr.vmem [resolvable:$true] %s500
          %s502 = sshll.u32 %s498, 4
          %s503 = int_to_ptr.hbm [resolvable:$true] %s502
          %505 = dma.vmem_to_hbm [thread:$0]  %s501, 32, %s503, %s469
        $region36: #{tpu_custom_call.1} parent=27 // pred_fallthru
          _
      $region28: #{tpu_custom_call.1} parent=5 // pred_fallthru
        _
      %p506 = scmp.le.s32.totalorder 2, %s16
      // Predicated region
      $region37: #{tpu_custom_call.1} parent=5 // pred_check
        %p507 = pneg %p506
      $region38: #{tpu_custom_call.1} parent=5 // pred_check_branch
        %509 = sbr.rel (%p507) target = $region40
      $region39: #{tpu_custom_call.1} parent=5 // pred_region
        %s510 = ssub.s32 %s16, 2
        // Predicated region
        $region41: #{tpu_custom_call.1} parent=39 // pred_check
          %p511 = pneg %p111
        $region42: #{tpu_custom_call.1} parent=39 // pred_check_branch
          %513 = sbr.rel (%p511) target = $region44
        $region43: #{tpu_custom_call.1} parent=39 // pred_region
          %s514 = sand.u32 %s96, 1
          %s515 = scalar_lea.sflag [#allocation3], %s514
          %s516 = sand.u32 %s96, 1
          %s517 = smul.addr %s516, 64
          %s518 = scalar_lea.vmem [#allocation2], %s517
          %520 = dma.done %s515, 1024
        $region44: #{tpu_custom_call.1} parent=39 // pred_fallthru
          _
        // Predicated region
        $region45: #{tpu_custom_call.1} parent=39 // pred_check
          %p521 = pneg %p139
        $region46: #{tpu_custom_call.1} parent=39 // pred_check_branch
          %523 = sbr.rel (%p521) target = $region48
        $region47: #{tpu_custom_call.1} parent=39 // pred_region
          %s524 = sand.u32 %s124, 1
          %s525 = scalar_lea.sflag [#allocation5], %s524
          %s526 = sand.u32 %s124, 1
          %s527 = smul.addr %s526, 2
          %s528 = scalar_lea.vmem [#allocation4], %s527
          %530 = dma.done %s525, 32
        $region48: #{tpu_custom_call.1} parent=39 // pred_fallthru
          _
      $region40: #{tpu_custom_call.1} parent=5 // pred_fallthru
        _
    $region6: #{tpu_custom_call.1} parent=1 // loop_footer
      %s20 = sadd.s32 1, %s16
    $region7: #{tpu_custom_call.1} parent=1 // loop_footer_branch
      %15 = sbr.rel target = $region3
    $region8: #{tpu_custom_call.1} parent=1 // loop_exit
      _
    %531 = vsyncpa [#allocation3], 1
    %s532 = scalar_lea.sflag [#allocation3], 1
    %533 = vsyncpa %s532, 1
    %534 = vsyncpa [#allocation5], 1
    %s535 = scalar_lea.sflag [#allocation5], 1
    %536 = vsyncpa %s535, 1

</llo_original>
